<compile_context>
chip_gen: v5e
topology: v5e:2x2
jax: 0.10.0
libtpu: 0.0.40
codegen_flags: <defaults>
</compile_context>

<pallas_src>
import jax
import jax.numpy as jnp
from jax.experimental import pallas as pl
from jax.experimental.pallas import tpu as pltpu

WEIGHTS_DTYPE = jnp.bfloat16  # the "dtype" argument of ToWeightsDType


def _to_weights_dtype_kernel(x_ref, w1_ref, b1_ref, w2_ref, b2_ref, o_ref):
    # x tile for this grid step; weights/biases are the same VMEM-resident
    # block every step (their index_maps return (0, 0)).
    x_bf = x_ref[...].astype(jnp.bfloat16)

    # Linear 1: bf16 x bf16 -> f32 accumulate (single MXU pass).
    h = jnp.dot(x_bf, w1_ref[...], preferred_element_type=jnp.float32)
    h = h + b1_ref[...]                                   # f32 bias add (VPU)
    # SiLU: exp and reciprocal both on the EUP slot; divide kept off the VALU.
    h = h * pl.reciprocal(1.0 + jnp.exp(-h), approx=True)

    # Linear 2: bf16 x bf16 -> f32 accumulate.
    y = jnp.dot(h.astype(jnp.bfloat16), w2_ref[...],
                preferred_element_type=jnp.float32)
    y = y + b2_ref[...]

    o_ref[...] = y.astype(o_ref.dtype)                    # .to(self.dtype)


def prepare_params(w1, b1, w2, b2):
    """Cast parameters once (module-init time).  The TimestepEmbedding weights
    are frozen during the guidance loop, so the bf16/f32 copies are cached
    instead of being re-cast (2-4 extra XLA launches) on every forward."""
    return (w1.astype(jnp.bfloat16), b1.astype(jnp.float32),
            w2.astype(jnp.bfloat16), b2.astype(jnp.float32))


def _cdiv(a, b):
    return -(-a // b)


def _round_up(n, m):
    return ((n + m - 1) // m) * m


def _choose_batch_tile(batch, block_batch):
    """Pick a batch tile size tb and grid length.

    - batch < 2048: one exact full-array block (grid=1).  The problem is tiny
      and launch-overhead dominated; splitting only adds per-step cost.
    - batch >= 2048: split into an EVEN number of 16-aligned tiles, each
      <= block_batch and >= ~1024 rows, so v7x's two TensorCores both get work
      while each step's DMA still hides the ~0.35 us per-step overhead.
    Partial trailing blocks are masked by Pallas (no host-side padding).
    """
    block_batch = max(16, (block_batch // 16) * 16)
    if batch < 2048:
        return batch, 1
    n_steps = 2 * _cdiv(batch, 2 * block_batch)          # smallest even count
    tb = min(_round_up(_cdiv(batch, n_steps), 16), block_batch)
    return tb, _cdiv(batch, tb)


def to_weights_dtype_forward(x, w1_bf, b1_f32, w2_bf, b2_f32,
                             out_dtype=WEIGHTS_DTYPE, block_batch=4096):
    """Runs ToWeightsDType(TimestepEmbedding(...), out_dtype)(x).

    x:     [batch, in_features] (f32)
    w1_bf: [in_features, hidden] bf16,  b1_f32: [1, hidden] f32
    w2_bf: [hidden, out_features] bf16, b2_f32: [1, out_features] f32
    (use `prepare_params` once to produce the cast parameter copies)
    """
    batch, in_ch = x.shape
    hidden = w1_bf.shape[1]
    out_ch = w2_bf.shape[1]
    assert w1_bf.shape == (in_ch, hidden)
    assert b1_f32.shape == (1, hidden)
    assert w2_bf.shape == (hidden, out_ch)
    assert b2_f32.shape == (1, out_ch)

    tb, n_steps = _choose_batch_tile(batch, block_batch)
    grid = (n_steps,)

    # Advisory cost so XLA doesn't over-schedule around this small custom call.
    flops = 2 * batch * (in_ch * hidden + hidden * out_ch)
    bytes_accessed = (
        batch * in_ch * x.dtype.itemsize
        + w1_bf.size * 2 + w2_bf.size * 2
        + b1_f32.size * 4 + b2_f32.size * 4
        + batch * out_ch * jnp.dtype(out_dtype).itemsize
    )
    cost = pl.CostEstimate(flops=flops,
                           transcendentals=batch * hidden,
                           bytes_accessed=bytes_accessed)

    # Scoped-VMEM estimate: double-buffered x/out tiles + (double-buffered)
    # resident parameters.  Raise the limit only when the v5e default (16 MiB)
    # would be exceeded; cap at v7x's 64 MiB physical VMEM.
    vmem_est = (2 * tb * (in_ch * 4 + out_ch * jnp.dtype(out_dtype).itemsize)
                + 2 * (in_ch * hidden + hidden * out_ch) * 2
                + 2 * (hidden + out_ch) * 4)
    cp_kwargs = {"dimension_semantics": ("parallel",)}  # v7x: 2-TC grid split
    if vmem_est > 12 * 1024 * 1024:
        cp_kwargs["vmem_limit_bytes"] = min(2 * vmem_est, 64 * 1024 * 1024)

    out = pl.pallas_call(
        _to_weights_dtype_kernel,
        out_shape=jax.ShapeDtypeStruct((batch, out_ch), out_dtype),
        grid_spec=pltpu.PrefetchScalarGridSpec(
            num_scalar_prefetch=0,
            grid=grid,
            in_specs=[
                pl.BlockSpec((tb, in_ch), lambda i: (i, 0)),       # x tiles
                pl.BlockSpec((in_ch, hidden), lambda i: (0, 0)),   # W1 resident
                pl.BlockSpec((1, hidden), lambda i: (0, 0)),       # b1 resident
                pl.BlockSpec((hidden, out_ch), lambda i: (0, 0)),  # W2 resident
                pl.BlockSpec((1, out_ch), lambda i: (0, 0)),       # b2 resident
            ],
            out_specs=pl.BlockSpec((tb, out_ch), lambda i: (i, 0)),
        ),
        compiler_params=pltpu.CompilerParams(**cp_kwargs),
        cost_estimate=cost,
    )(x, w1_bf, b1_f32, w2_bf, b2_f32)

    return out


def _reference(x, w1, b1, w2, b2, out_dtype=WEIGHTS_DTYPE):
    h = x @ w1 + b1
    h = h * jax.nn.sigmoid(h)
    y = h @ w2 + b2
    return y.astype(out_dtype)


if __name__ == "__main__":
    # Small shapes consistent with TimestepEmbedding(in_channels, hidden):
    # batch=8 camera-condition rows, in_channels=16, hidden=out=128.
    batch, in_ch, hidden = 8, 16, 128

    key = jax.random.PRNGKey(0)
    kx, kw1, kb1, kw2, kb2 = jax.random.split(key, 5)

    x = jax.random.normal(kx, (batch, in_ch), dtype=jnp.float32)
    # deterministic synthetic parameters (no checkpoint loading)
    w1 = jax.random.normal(kw1, (in_ch, hidden), dtype=jnp.float32) * 0.05
    b1 = jax.random.normal(kb1, (1, hidden), dtype=jnp.float32) * 0.01
    w2 = jax.random.normal(kw2, (hidden, hidden), dtype=jnp.float32) * 0.05
    b2 = jax.random.normal(kb2, (1, hidden), dtype=jnp.float32) * 0.01

    # Cast parameters once (module init), not per forward call.
    params = prepare_params(w1, b1, w2, b2)

    out = to_weights_dtype_forward(x, *params)
    out = jax.block_until_ready(out)

    ref = _reference(x, w1, b1, w2, b2)
    assert out.shape == (batch, hidden)
    assert out.dtype == WEIGHTS_DTYPE
    err = jnp.max(jnp.abs(out.astype(jnp.float32) - ref.astype(jnp.float32)))
    assert float(err) < 1e-1, f"max abs err {err}"

    print("KERNEL_OK")
</pallas_src>

<mosaic_0001>
module attributes {stable_mosaic.version = 11 : i64} {
  func.func @_to_weights_dtype_kernel(%arg0: i32, %arg1: memref<8x16xf32, #tpu.memory_space<vmem>>, %arg2: memref<16x128xbf16, #tpu.memory_space<vmem>>, %arg3: memref<1x128xf32, #tpu.memory_space<vmem>>, %arg4: memref<128x128xbf16, #tpu.memory_space<vmem>>, %arg5: memref<1x128xf32, #tpu.memory_space<vmem>>, %arg6: memref<8x128xbf16, #tpu.memory_space<vmem>>) attributes {dimension_semantics = [#tpu.dimension_semantics<parallel>], iteration_bounds = array<i64: 1>, scalar_prefetch = 0 : i64, scratch_operands = 0 : i64, tpu.core_type = #tpu.core_type<tc>, window_params = [{transform_indices = @transform_0, window_bounds = array<i64: 8, 16>}, {pipeline_mode = #tpu.pipeline_mode<synchronous>, transform_indices = @transform_1, window_bounds = array<i64: 16, 128>}, {pipeline_mode = #tpu.pipeline_mode<synchronous>, transform_indices = @transform_2, window_bounds = array<i64: 1, 128>}, {pipeline_mode = #tpu.pipeline_mode<synchronous>, transform_indices = @transform_3, window_bounds = array<i64: 128, 128>}, {pipeline_mode = #tpu.pipeline_mode<synchronous>, transform_indices = @transform_4, window_bounds = array<i64: 1, 128>}, {transform_indices = @transform_5, window_bounds = array<i64: 8, 128>}]} {
    %c0 = arith.constant 0 : index
    %c0_0 = arith.constant 0 : index
    %0 = vector.load %arg1[%c0, %c0_0] : memref<8x16xf32, #tpu.memory_space<vmem>>, vector<8x16xf32>
    %1 = arith.truncf %0 : vector<8x16xf32> to vector<8x16xbf16>
    %c0_1 = arith.constant 0 : index
    %c0_2 = arith.constant 0 : index
    %2 = vector.load %arg2[%c0_1, %c0_2] : memref<16x128xbf16, #tpu.memory_space<vmem>>, vector<16x128xbf16>
    %cst = arith.constant dense<0.000000e+00> : vector<8x128xf32>
    %3 = tpu.matmul %1, %2, %cst {dimension_numbers = #tpu.dot_dimension_numbers<[1], [0], [0], [1], [0, 0, 1, 1], [], []>} : vector<8x16xbf16>, vector<16x128xbf16>, vector<8x128xf32> -> vector<8x128xf32>
    %c0_3 = arith.constant 0 : index
    %c0_4 = arith.constant 0 : index
    %4 = vector.load %arg3[%c0_3, %c0_4] : memref<1x128xf32, #tpu.memory_space<vmem>>, vector<1x128xf32>
    %5 = vector.broadcast %4 : vector<1x128xf32> to vector<8x128xf32>
    %6 = arith.addf %3, %5 : vector<8x128xf32>
    %cst_5 = arith.constant 0.000000e+00 : f32
    %7 = vector.broadcast %cst_5 : f32 to vector<8x128xf32>
    %8 = arith.subf %7, %6 : vector<8x128xf32>
    %9 = math.exp %8 : vector<8x128xf32>
    %cst_6 = arith.constant 1.000000e+00 : f32
    %10 = vector.broadcast %cst_6 : f32 to vector<8x128xf32>
    %11 = arith.addf %10, %9 : vector<8x128xf32>
    %12 = tpu.reciprocal %11 {approx = true} : vector<8x128xf32> -> vector<8x128xf32>
    %13 = arith.mulf %6, %12 : vector<8x128xf32>
    %14 = arith.truncf %13 : vector<8x128xf32> to vector<8x128xbf16>
    %c0_7 = arith.constant 0 : index
    %c0_8 = arith.constant 0 : index
    %15 = vector.load %arg4[%c0_7, %c0_8] : memref<128x128xbf16, #tpu.memory_space<vmem>>, vector<128x128xbf16>
    %cst_9 = arith.constant dense<0.000000e+00> : vector<8x128xf32>
    %16 = tpu.matmul %14, %15, %cst_9 {dimension_numbers = #tpu.dot_dimension_numbers<[1], [0], [0], [1], [0, 0, 1, 1], [], []>} : vector<8x128xbf16>, vector<128x128xbf16>, vector<8x128xf32> -> vector<8x128xf32>
    %c0_10 = arith.constant 0 : index
    %c0_11 = arith.constant 0 : index
    %17 = vector.load %arg5[%c0_10, %c0_11] : memref<1x128xf32, #tpu.memory_space<vmem>>, vector<1x128xf32>
    %18 = vector.broadcast %17 : vector<1x128xf32> to vector<8x128xf32>
    %19 = arith.addf %16, %18 : vector<8x128xf32>
    %20 = arith.truncf %19 : vector<8x128xf32> to vector<8x128xbf16>
    %c0_12 = arith.constant 0 : index
    %c0_13 = arith.constant 0 : index
    %21 = vector.load %arg6[%c0_12, %c0_13] : memref<8x128xbf16, #tpu.memory_space<vmem>>, vector<8x128xbf16>
    tpu.vector_store %arg6[%c0_12, %c0_13], %20 {strides = array<i32>} : memref<8x128xbf16, #tpu.memory_space<vmem>>, vector<8x128xbf16>,
    return
  }
  func.func @transform_0(%arg0: i32) -> (i32, i32) {
    %c0_i32 = arith.constant 0 : i32
    %c0_i32_0 = arith.constant 0 : i32
    return %arg0, %c0_i32 : i32, i32
  }
  func.func @transform_1(%arg0: i32) -> (i32, i32) {
    %c0_i32 = arith.constant 0 : i32
    %c0_i32_0 = arith.constant 0 : i32
    %c0_i32_1 = arith.constant 0 : i32
    return %c0_i32, %c0_i32_0 : i32, i32
  }
  func.func @transform_2(%arg0: i32) -> (i32, i32) {
    %c0_i32 = arith.constant 0 : i32
    %c0_i32_0 = arith.constant 0 : i32
    %c0_i32_1 = arith.constant 0 : i32
    return %c0_i32, %c0_i32_0 : i32, i32
  }
  func.func @transform_3(%arg0: i32) -> (i32, i32) {
    %c0_i32 = arith.constant 0 : i32
    %c0_i32_0 = arith.constant 0 : i32
    %c0_i32_1 = arith.constant 0 : i32
    return %c0_i32, %c0_i32_0 : i32, i32
  }
  func.func @transform_4(%arg0: i32) -> (i32, i32) {
    %c0_i32 = arith.constant 0 : i32
    %c0_i32_0 = arith.constant 0 : i32
    %c0_i32_1 = arith.constant 0 : i32
    return %c0_i32, %c0_i32_0 : i32, i32
  }
  func.func @transform_5(%arg0: i32) -> (i32, i32) {
    %c0_i32 = arith.constant 0 : i32
    %c0_i32_0 = arith.constant 0 : i32
    return %arg0, %c0_i32 : i32, i32
  }
}

</mosaic_0001>

<llo_original>
// kernel: tpu_custom_call.1
$region0: #{tpu_custom_call.1}
  #allocation0 [shape = 'u32[]', space=smem, size = 0x4, offset = 0x4, fixed_abs, tag = 'smem constant byte address 0x4 - core index']
  #allocation1 [shape = 'u32[72,128]{1,0:T(1,128)}', space=vmem, size = 0x9000, scoped, tag = 'internal scratch']
  %s0 = inlined_call_operand.hbm [shape: f32[8,16], index: 0, kind: input, shape index: {}]
  %s1 = inlined_call_operand.hbm [shape: bf16[16,128], index: 1, kind: input, shape index: {}]
  %s2 = inlined_call_operand.vmem [shape: f32[1,128], index: 2, kind: input, shape index: {}]
  %s3 = inlined_call_operand.hbm [shape: bf16[128,128], index: 3, kind: input, shape index: {}]
  %s4 = inlined_call_operand.vmem [shape: f32[1,128], index: 4, kind: input, shape index: {}]
  %s5 = inlined_call_operand.hbm [shape: bf16[8,128], index: 5, kind: output, shape index: {}]
  %s6 = sld [smem:[#allocation0]]
  $region42: #{tpu_custom_call.1} parent=0
    _
  %s8 = ssub.s32 1, %s6
  %s9 = scalar_select 0, %s8, %s6
  $region1: #{tpu_custom_call.1} parent=0
    #allocation2 [shape = 'u8[4096]{0}', space=vmem, size = 0x1000, scoped, tag = 'input window, operand 0, single buffered']
    #allocation3 [shape = 's32[1]{0}', space=sflag, size = 0x4, scoped, tag = 'scoped memory for tpu_custom_call.1']
    #allocation4 [shape = 's32[1]{0}', space=sflag, size = 0x4, scoped, tag = 'scoped memory for tpu_custom_call.1']
    #allocation5 [shape = 'u8[4096]{0}', space=vmem, size = 0x1000, scoped, tag = 'input window, operand 1, single buffered']
    #allocation6 [shape = 's32[1]{0}', space=sflag, size = 0x4, scoped, tag = 'scoped memory for tpu_custom_call.1']
    #allocation7 [shape = 'u8[32768]{0}', space=vmem, size = 0x8000, scoped, tag = 'input window, operand 3, single buffered']
    #allocation8 [shape = 'u8[2048]{0}', space=vmem, size = 0x800, scoped, tag = 'output window, operand 0, single buffered']
    %10 = vsyncpa [#allocation3], 0
    %11 = vsyncpa [#allocation6], 0
    %12 = vsyncpa [#allocation4], 0
    // Predicated region
    $region2: #{tpu_custom_call.1} parent=1 // pred_check
      _
    $region3: #{tpu_custom_call.1} parent=1 // pred_check_branch
      %14 = sbr.rel (0) target = $region5
    $region4: #{tpu_custom_call.1} parent=1 // pred_region
      %16 = vsyncadd [#allocation3], 0
      %s18 = sshll.u32 %s0, 4
      %s19 = int_to_ptr.hbm [resolvable:$true] %s18
      %s20 = sshll.u32 [#allocation2], 4
      %s21 = int_to_ptr.vmem [resolvable:$true] %s20
      %23 = dma.hbm_to_vmem [thread:$0]  %s19, 128, %s21, [#allocation3]
    $region5: #{tpu_custom_call.1} parent=1 // pred_fallthru
      _
    // Predicated region
    $region6: #{tpu_custom_call.1} parent=1 // pred_check
      _
    $region7: #{tpu_custom_call.1} parent=1 // pred_check_branch
      %25 = sbr.rel (0) target = $region9
    $region8: #{tpu_custom_call.1} parent=1 // pred_region
      %27 = vsyncadd [#allocation6], 0
      %s28 = sshll.u32 %s1, 4
      %s29 = int_to_ptr.hbm [resolvable:$true] %s28
      %s30 = sshll.u32 [#allocation5], 4
      %s31 = int_to_ptr.vmem [resolvable:$true] %s30
      %36 = dma.hbm_to_vmem [thread:$0]  %s29, 128, %s31, [#allocation6], 64, 64, 4
    $region9: #{tpu_custom_call.1} parent=1 // pred_fallthru
      _
    // Predicated region
    $region10: #{tpu_custom_call.1} parent=1 // pred_check
      _
    $region11: #{tpu_custom_call.1} parent=1 // pred_check_branch
      %38 = sbr.rel (0) target = $region13
    $region12: #{tpu_custom_call.1} parent=1 // pred_region
      _
    $region13: #{tpu_custom_call.1} parent=1 // pred_fallthru
      _
    // Predicated region
    $region14: #{tpu_custom_call.1} parent=1 // pred_check
      _
    $region15: #{tpu_custom_call.1} parent=1 // pred_check_branch
      %40 = sbr.rel (0) target = $region17
    $region16: #{tpu_custom_call.1} parent=1 // pred_region
      %42 = vsyncadd [#allocation6], 0
      %s43 = sshll.u32 %s3, 4
      %s44 = int_to_ptr.hbm [resolvable:$true] %s43
      %s45 = sshll.u32 [#allocation7], 4
      %s46 = int_to_ptr.vmem [resolvable:$true] %s45
      %51 = dma.hbm_to_vmem [thread:$0]  %s44, 1024, %s46, [#allocation6], 64, 64, 4
    $region17: #{tpu_custom_call.1} parent=1 // pred_fallthru
      _
    // Predicated region
    $region18: #{tpu_custom_call.1} parent=1 // pred_check
      _
    $region19: #{tpu_custom_call.1} parent=1 // pred_check_branch
      %53 = sbr.rel (0) target = $region21
    $region20: #{tpu_custom_call.1} parent=1 // pred_region
      _
    $region21: #{tpu_custom_call.1} parent=1 // pred_fallthru
      _
    // Predicated region
    $region22: #{tpu_custom_call.1} parent=1 // pred_check
      _
    $region23: #{tpu_custom_call.1} parent=1 // pred_check_branch
      %55 = sbr.rel (0) target = $region25
    $region24: #{tpu_custom_call.1} parent=1 // pred_region
      %57 = dma.done [#allocation3], 128
    $region25: #{tpu_custom_call.1} parent=1 // pred_fallthru
      _
    // Predicated region
    $region26: #{tpu_custom_call.1} parent=1 // pred_check
      _
    $region27: #{tpu_custom_call.1} parent=1 // pred_check_branch
      %59 = sbr.rel (0) target = $region29
    $region28: #{tpu_custom_call.1} parent=1 // pred_region
      %61 = dma.done [#allocation6], 128
    $region29: #{tpu_custom_call.1} parent=1 // pred_fallthru
      _
    // Predicated region
    $region30: #{tpu_custom_call.1} parent=1 // pred_check
      _
    $region31: #{tpu_custom_call.1} parent=1 // pred_check_branch
      %63 = sbr.rel (0) target = $region33
    $region32: #{tpu_custom_call.1} parent=1 // pred_region
      %65 = dma.done [#allocation6], 1024
    $region33: #{tpu_custom_call.1} parent=1 // pred_fallthru
      _
    %v67 = vld [vmem:[#allocation2] sm:$0xff]
    %v68 = vpack.c.bf16 %v67, %v67
    %v69 = vld [vmem:[#allocation5] sm:$0xf]
    %v70 = vld [vmem:[#allocation5 + $0x4] sm:$0xf]
    %v71 = vld [vmem:[%s2] sm:$0x1]
    %v73 = vperm.slane %v71, 0
    %v77 = vunpack.c.l.b16 %v69
    %v78 = vunpack.c.l.b16 %v70
    %v79 = vpack.c.b16 %v78, %v77
    %vm81 = vcmask 130048
    %v83 = vsel %vm81, %v68, 0
    %85 = vmatpush.bf16.msra.mxu0 0
    %86 = vmatpush.bf16.msra.mxu0 0
    %87 = vmatpush.bf16.msra.mxu0 0
    %88 = vmatpush.bf16.msra.mxu0 0
    %89 = vmatpush.bf16.msra.mxu0 0
    %90 = vmatpush.bf16.msra.mxu0 0
    %91 = vmatpush.bf16.msra.mxu0 0
    %92 = vmatpush.bf16.msra.mxu0 %v79
    %93 = vmatmul.bf16.gmra.mxu0 %v83
    %v94 = vpop.f32.mrf.mxu0
    %v95 = vadd.f32 %v73, %v94
    %v96 = vpop.f32.mrf.mxu0
    %97 = vdwg.mxu0
    %v98 = vsub.f32 0.0, %v95
    %v99 = vmul.f32 %v98, 1.442695
    %v100 = vpow.pop %v99
    %v101 = vadd.f32 %v100, 1.0
    %v102 = vrcp.pop %v101
    %v103 = vmul.f32 %v95, %v102
    %v104 = vpack.c.bf16 %v103, %v103
    %v105 = vld [vmem:[#allocation7] sm:$0xf]
    %v106 = vld [vmem:[#allocation7 + $0x4] sm:$0xf]
    %v107 = vld [vmem:[#allocation7 + $0x8] sm:$0xf]
    %v108 = vld [vmem:[#allocation7 + $0xc] sm:$0xf]
    %v109 = vld [vmem:[#allocation7 + $0x10] sm:$0xf]
    %v110 = vld [vmem:[#allocation7 + $0x14] sm:$0xf]
    %v111 = vld [vmem:[#allocation7 + $0x18] sm:$0xf]
    %v112 = vld [vmem:[#allocation7 + $0x1c] sm:$0xf]
    %v113 = vld [vmem:[#allocation7 + $0x20] sm:$0xf]
    %v114 = vld [vmem:[#allocation7 + $0x24] sm:$0xf]
    %v115 = vld [vmem:[#allocation7 + $0x28] sm:$0xf]
    %v116 = vld [vmem:[#allocation7 + $0x2c] sm:$0xf]
    %v117 = vld [vmem:[#allocation7 + $0x30] sm:$0xf]
    %v118 = vld [vmem:[#allocation7 + $0x34] sm:$0xf]
    %v119 = vld [vmem:[#allocation7 + $0x38] sm:$0xf]
    %v120 = vld [vmem:[#allocation7 + $0x3c] sm:$0xf]
    %v121 = vld [vmem:[%s4] sm:$0x1]
    %v123 = vperm.slane %v121, 0
    %v141 = vunpack.c.l.b16 %v105
    %v142 = vunpack.c.l.b16 %v106
    %v143 = vunpack.c.l.b16 %v107
    %v144 = vunpack.c.l.b16 %v108
    %v145 = vunpack.c.l.b16 %v109
    %v146 = vunpack.c.l.b16 %v110
    %v147 = vunpack.c.l.b16 %v111
    %v148 = vunpack.c.l.b16 %v112
    %v149 = vunpack.c.l.b16 %v113
    %v150 = vunpack.c.l.b16 %v114
    %v151 = vunpack.c.l.b16 %v115
    %v152 = vunpack.c.l.b16 %v116
    %v153 = vunpack.c.l.b16 %v117
    %v154 = vunpack.c.l.b16 %v118
    %v155 = vunpack.c.l.b16 %v119
    %v156 = vunpack.c.l.b16 %v120
    %v157 = vpack.c.b16 %v142, %v141
    %v158 = vpack.c.b16 %v144, %v143
    %v159 = vpack.c.b16 %v146, %v145
    %v160 = vpack.c.b16 %v148, %v147
    %v161 = vpack.c.b16 %v150, %v149
    %v162 = vpack.c.b16 %v152, %v151
    %v163 = vpack.c.b16 %v154, %v153
    %v164 = vpack.c.b16 %v156, %v155
    %173 = vmatpush.bf16.msra.mxu0 %v164
    %174 = vmatpush.bf16.msra.mxu0 %v163
    %175 = vmatpush.bf16.msra.mxu0 %v162
    %176 = vmatpush.bf16.msra.mxu0 %v161
    %177 = vmatpush.bf16.msra.mxu0 %v160
    %178 = vmatpush.bf16.msra.mxu0 %v159
    %179 = vmatpush.bf16.msra.mxu0 %v158
    %180 = vmatpush.bf16.msra.mxu0 %v157
    %181 = vmatmul.bf16.gmra.mxu0 %v104
    %v182 = vpop.f32.mrf.mxu0
    %v183 = vadd.f32 %v123, %v182
    %v184 = vpop.f32.mrf.mxu0
    %185 = vdwg.mxu0
    %v186 = vpack.c.bf16 %v183, %v183
    %187 = vst [vmem:[#allocation8] sm:$0xf] %v186
    // Predicated region
    $region34: #{tpu_custom_call.1} parent=1 // pred_check
      _
    $region35: #{tpu_custom_call.1} parent=1 // pred_check_branch
      %189 = sbr.rel (0) target = $region37
    $region36: #{tpu_custom_call.1} parent=1 // pred_region
      %191 = vsyncadd [#allocation4], 0
      %s193 = sshll.u32 [#allocation8], 4
      %s194 = int_to_ptr.vmem [resolvable:$true] %s193
      %s195 = sshll.u32 %s5, 4
      %s196 = int_to_ptr.hbm [resolvable:$true] %s195
      %198 = dma.vmem_to_hbm [thread:$0]  %s194, 64, %s196, [#allocation4]
    $region37: #{tpu_custom_call.1} parent=1 // pred_fallthru
      _
    // Predicated region
    $region38: #{tpu_custom_call.1} parent=1 // pred_check
      _
    $region39: #{tpu_custom_call.1} parent=1 // pred_check_branch
      %200 = sbr.rel (0) target = $region41
    $region40: #{tpu_custom_call.1} parent=1 // pred_region
      %202 = dma.done [#allocation4], 64
    $region41: #{tpu_custom_call.1} parent=1 // pred_fallthru
      _
    %203 = vsyncpa [#allocation3], 1
    %204 = vsyncpa [#allocation6], 1
    %205 = vsyncpa [#allocation4], 1

</llo_original>
